<compile_context>
chip_gen: v6e
topology: v6e:2x2x1
jax: 0.10.0
libtpu: 0.0.40
codegen_flags: <defaults>
</compile_context>

<pallas_src>
import math

import jax
import jax.numpy as jnp
import numpy as np
from jax.experimental import pallas as pl
from jax.experimental.pallas import tpu as pltpu


def _num_tensorcores():
    """v7x packs 2 TensorCores per chip; earlier TPU generations have 1."""
    try:
        kind = jax.devices()[0].device_kind.lower()
    except Exception:
        return 1
    return 2 if ("v7" in kind or "7x" in kind) else 1


# ----------------------------- Pallas kernel ------------------------------ #
def conv_sum_pallas(x, w, pad, *, batch_tile=None,
                    vmem_budget_bytes=16 * 1024 * 1024):
    """Per-sample dynamic conv + sum over output channels.

    x: (B, C, H, W)     embeddings (NCHW)
    w: (B, O, C, K, K)  per-sample conv kernels (from the text model)
    -> (B, 1, Ho, Wo)   channel-summed heatmap (Ho=H, Wo=W for odd K)
    """
    B, C, H, W = x.shape
    _, O, _, K, _ = w.shape
    Hp, Wp = H + 2 * pad, W + 2 * pad
    Ho, Wo = Hp - K + 1, Wp - K + 1            # == H, W for odd K, pad=(K-1)//2
    KK = K * K

    # Lane-dense output width, rounded to a multiple of 128 so every tap load
    # and the output store are full unmasked vregs.
    L = ((Ho * Wp + 127) // 128) * 128
    # Flat padded-image scratch width: must hold the padded image and keep every
    # shifted tap slice [s, s+L) in bounds (max s = (K-1)*Wp + (K-1)).
    Lf = max(Hp * Wp, (K - 1) * (Wp + 1) + L)
    Lf = ((Lf + 127) // 128) * 128

    # ---- O-fold: conv-then-sum over out channels == conv with summed kernel.
    w_folded = jnp.sum(w.astype(jnp.float32), axis=1).reshape(B, C, KK)
    # ---- lane-dense input view: contiguous reshape, no padded HBM copy.
    x_flat = x.reshape(B, C, H * W)
    x_bytes = x.dtype.itemsize

    # Per-sample VMEM footprint: double-buffered in/weight/out blocks + scratch.
    per_sample = (2 * C * H * W * x_bytes + 2 * C * KK * 4
                  + 2 * L * x_bytes + C * Lf * 4)

    # Keep >= 2 parallel grid steps on v7x so the batch shards across both
    # TensorCores; single-TC chips prefer the biggest VMEM-fitting tile.
    min_steps = min(B, _num_tensorcores())
    if batch_tile is None:
        divs = [t for t in range(1, B + 1) if B % t == 0]
        fit = [t for t in divs if t * per_sample <= vmem_budget_bytes] or [1]
        good = [t for t in fit if B // t >= min_steps]
        batch_tile = max(good) if good else max(fit)
    bt = batch_tile
    assert B % bt == 0, (B, bt)
    grid = (B // bt,)

    # Scoped VMEM limit sized for the smallest part (v7x: 64 MiB per TC).
    vmem_limit = int(min(max(2 * bt * per_sample, 8 * 1024 * 1024),
                         48 * 1024 * 1024))

    cost = pl.CostEstimate(
        flops=2 * B * C * KK * Ho * Wo,
        transcendentals=0,
        bytes_accessed=(B * C * H * W * x_bytes + B * C * KK * 4
                        + B * L * x_bytes),
    )

    def kernel(x_ref, w_ref, o_ref, xpad_ref):
        # x_ref:    (bt, C, H*W)  VMEM  spatially-flat input tile
        # w_ref:    (bt, C, K*K)  VMEM  O-folded per-sample conv weights
        # o_ref:    (bt, 1, L)    VMEM  channel-summed heatmap (pad/slack lanes incl.)
        # xpad_ref: (bt, C, Lf)   VMEM  zero-padded flat padded-image scratch
        #
        # Zero the halo/slack lanes every step.  (Gating this on program_id==0
        # is unsafe on v7x: the parallel grid axis is sharded across 2 cores and
        # the core that never runs step 0 would see uninitialized halo lanes.)
        xpad_ref[...] = jnp.zeros(xpad_ref.shape, xpad_ref.dtype)
        # Interior rows: one narrow row-copy per image row; halo lanes stay zero.
        for h in range(H):
            dst = (pad + h) * Wp + pad
            xpad_ref[:, :, dst:dst + W] = (
                x_ref[:, :, h * W:(h + 1) * W].astype(jnp.float32))

        # Vectorized conv + channel sum: K*K tap FMAs over (bt*C) sublanes.
        acc = jnp.zeros((bt, C, L), jnp.float32)
        for ky in range(K):
            for kx in range(K):
                tap = ky * K + kx
                wv = w_ref[:, :, tap:tap + 1]            # (bt, C, 1) lane-bcast
                s = ky * Wp + kx
                acc = acc + wv * xpad_ref[:, :, s:s + L]
        # Channel reduction over the sublane axis (XLU), one lane-dense store.
        o_ref[...] = jnp.sum(acc, axis=1, keepdims=True).astype(o_ref.dtype)

    out_flat = pl.pallas_call(
        kernel,
        out_shape=jax.ShapeDtypeStruct((B, 1, L), x.dtype),
        grid=grid,
        in_specs=[
            pl.BlockSpec((bt, C, H * W), lambda i: (i, 0, 0)),
            pl.BlockSpec((bt, C, KK), lambda i: (i, 0, 0)),
        ],
        out_specs=pl.BlockSpec((bt, 1, L), lambda i: (i, 0, 0)),
        scratch_shapes=[pltpu.VMEM((bt, C, Lf), jnp.float32)],
        compiler_params=pltpu.CompilerParams(
            dimension_semantics=("parallel",),
            vmem_limit_bytes=vmem_limit,
        ),
        cost_estimate=cost,
    )(x_flat, w_folded)

    # Trim the pad/slack columns and restore the NCHW single-channel layout.
    out = out_flat[:, 0, :Ho * Wp].reshape(B, Ho, Wp)[:, :, :Wo]
    return out[:, None, :, :]


# ----------------------------- text model glue ---------------------------- #
# TODO(synk): the external `text_model` passed to the PyTorch ctor is not
# defined in the module; approximated by a deterministic single-layer LSTM +
# output linear in plain JAX (glue, not Pallas).
def init_text_model_params(key, vocab_size, text_embed, hidden, out_dim):
    ks = jax.random.split(key, 4)
    s = 0.1
    return dict(
        embed=s * jax.random.normal(ks[0], (vocab_size, text_embed), jnp.float32),
        w_ih=s * jax.random.normal(ks[1], (4 * hidden, text_embed), jnp.float32),
        w_hh=s * jax.random.normal(ks[2], (4 * hidden, hidden), jnp.float32),
        b=jnp.zeros((4 * hidden,), jnp.float32),
        w_out=s * jax.random.normal(ks[3], (out_dim, hidden), jnp.float32),
        b_out=jnp.zeros((out_dim,), jnp.float32),
    )


def text_model_forward(text, params, hidden_size):
    # text: (B, S) int32 token ids; time-major like `text.transpose(0, 1)`
    text_t = jnp.transpose(text, (1, 0))                 # (S, B)
    emb = params["embed"][text_t]                        # (S, B, E)
    B = text.shape[0]
    h0 = jnp.zeros((B, hidden_size), jnp.float32)        # init_hidden
    c0 = jnp.zeros((B, hidden_size), jnp.float32)

    def step(carry, x_t):
        h, c = carry
        z = x_t @ params["w_ih"].T + h @ params["w_hh"].T + params["b"]
        i, f, g, o = jnp.split(z, 4, axis=-1)
        i, f, o = jax.nn.sigmoid(i), jax.nn.sigmoid(f), jax.nn.sigmoid(o)
        g = jnp.tanh(g)
        c = f * c + i * g
        h = o * jnp.tanh(c)
        return (h, c), None

    (h, _), _ = jax.lax.scan(step, (h0, c0), emb)
    return h @ params["w_out"].T + params["b_out"]       # (B, out_dim)


# ----------------------------- forward wrapper ----------------------------- #
def attention_global_forward(embeddings, text, params, *, embed_dim,
                             kernel_out_dim, kernel_size, global_coeffs,
                             lstm_hidden):
    assert kernel_size % 2 == 1
    padding = int(math.ceil(kernel_size / 2.0)) - 1

    lstm_out = text_model_forward(text, params, lstm_hidden)    # (B, D)
    lstm_kernel = lstm_out[:, :-global_coeffs].reshape(
        -1, kernel_out_dim, embed_dim, kernel_size, kernel_size)
    lstm_global = lstm_out[:, -global_coeffs:]

    local_heatmap = conv_sum_pallas(embeddings, lstm_kernel, padding)
    return local_heatmap, lstm_global


# ----------------------------- reference check ----------------------------- #
def conv_sum_ref(x, w, pad):
    B = x.shape[0]
    outs = []
    for b in range(B):
        o = jax.lax.conv_general_dilated(
            x[b:b + 1], w[b], window_strides=(1, 1),
            padding=[(pad, pad), (pad, pad)],
            dimension_numbers=("NCHW", "OIHW", "NCHW"),
        )
        outs.append(o)
    out = jnp.concatenate(outs, 0)
    return jnp.sum(out, axis=1, keepdims=True)


if __name__ == "__main__":
    # Small shapes consistent with the module's forward.
    B, C_IN, H, W = 2, 4, 16, 16         # embeddings: NCHW
    K_OUT, K_SIZE, GLOBAL_COEFFS = 4, 3, 4
    SEQ = 8
    VOCAB, TEXT_EMBED, LSTM_HIDDEN = 16, 32, 32
    OUT_DIM = K_OUT * C_IN * K_SIZE * K_SIZE + GLOBAL_COEFFS

    key = jax.random.PRNGKey(0)
    k_emb, k_txt, k_par = jax.random.split(key, 3)
    embeddings = jax.random.normal(k_emb, (B, C_IN, H, W), jnp.float32)
    text = jax.random.randint(k_txt, (B, SEQ), 0, VOCAB, dtype=jnp.int32)
    params = init_text_model_params(k_par, VOCAB, TEXT_EMBED, LSTM_HIDDEN, OUT_DIM)

    local_heatmap, lstm_global = attention_global_forward(
        embeddings, text, params,
        embed_dim=C_IN, kernel_out_dim=K_OUT, kernel_size=K_SIZE,
        global_coeffs=GLOBAL_COEFFS, lstm_hidden=LSTM_HIDDEN,
    )
    jax.block_until_ready((local_heatmap, lstm_global))

    assert local_heatmap.shape == (B, 1, H, W), local_heatmap.shape
    assert lstm_global.shape == (B, GLOBAL_COEFFS), lstm_global.shape

    # Cross-check the Pallas conv+sum against a plain-JAX reference.
    lstm_out = text_model_forward(text, params, LSTM_HIDDEN)
    lstm_kernel = lstm_out[:, :-GLOBAL_COEFFS].reshape(-1, K_OUT, C_IN, K_SIZE, K_SIZE)
    pad = int(math.ceil(K_SIZE / 2.0)) - 1
    ref = conv_sum_ref(embeddings, lstm_kernel, pad)
    np.testing.assert_allclose(np.asarray(local_heatmap), np.asarray(ref),
                               rtol=1e-4, atol=1e-4)

    print("KERNEL_OK")
</pallas_src>

<mosaic_0001>
module attributes {stable_mosaic.version = 11 : i64} {
  func.func @kernel(%arg0: i32, %arg1: memref<2x4x256xf32, #tpu.memory_space<vmem>>, %arg2: memref<2x4x9xf32, #tpu.memory_space<vmem>>, %arg3: memref<2x1x384xf32, #tpu.memory_space<vmem>>, %arg4: memref<2x4x512xf32, #tpu.memory_space<vmem>>) attributes {dimension_semantics = [#tpu.dimension_semantics<parallel>], iteration_bounds = array<i64: 1>, scalar_prefetch = 0 : i64, scratch_operands = 1 : i64, tpu.core_type = #tpu.core_type<tc>, window_params = [{transform_indices = @transform_0, window_bounds = array<i64: 2, 4, 256>}, {transform_indices = @transform_1, window_bounds = array<i64: 2, 4, 9>}, {transform_indices = @transform_2, window_bounds = array<i64: 2, 1, 384>}]} {
    %cst = arith.constant 0.000000e+00 : f32
    %0 = vector.broadcast %cst : f32 to vector<2x4x512xf32>
    %c0 = arith.constant 0 : index
    %c0_0 = arith.constant 0 : index
    %c0_1 = arith.constant 0 : index
    %1 = vector.load %arg4[%c0, %c0_0, %c0_1] : memref<2x4x512xf32, #tpu.memory_space<vmem>>, vector<2x4x512xf32>
    tpu.vector_store %arg4[%c0, %c0_0, %c0_1], %0 {strides = array<i32>} : memref<2x4x512xf32, #tpu.memory_space<vmem>>, vector<2x4x512xf32>,
    %c0_2 = arith.constant 0 : index
    %c0_3 = arith.constant 0 : index
    %c0_4 = arith.constant 0 : index
    %2 = vector.load %arg1[%c0_2, %c0_3, %c0_4] : memref<2x4x256xf32, #tpu.memory_space<vmem>>, vector<2x4x16xf32>
    %c0_5 = arith.constant 0 : index
    %c0_6 = arith.constant 0 : index
    %c19 = arith.constant 19 : index
    %3 = vector.load %arg4[%c0_5, %c0_6, %c19] : memref<2x4x512xf32, #tpu.memory_space<vmem>>, vector<2x4x16xf32>
    tpu.vector_store %arg4[%c0_5, %c0_6, %c19], %2 {strides = array<i32>} : memref<2x4x512xf32, #tpu.memory_space<vmem>>, vector<2x4x16xf32>,
    %c0_7 = arith.constant 0 : index
    %c0_8 = arith.constant 0 : index
    %c16 = arith.constant 16 : index
    %4 = vector.load %arg1[%c0_7, %c0_8, %c16] : memref<2x4x256xf32, #tpu.memory_space<vmem>>, vector<2x4x16xf32>
    %c0_9 = arith.constant 0 : index
    %c0_10 = arith.constant 0 : index
    %c37 = arith.constant 37 : index
    %5 = vector.load %arg4[%c0_9, %c0_10, %c37] : memref<2x4x512xf32, #tpu.memory_space<vmem>>, vector<2x4x16xf32>
    tpu.vector_store %arg4[%c0_9, %c0_10, %c37], %4 {strides = array<i32>} : memref<2x4x512xf32, #tpu.memory_space<vmem>>, vector<2x4x16xf32>,
    %c0_11 = arith.constant 0 : index
    %c0_12 = arith.constant 0 : index
    %c32 = arith.constant 32 : index
    %6 = vector.load %arg1[%c0_11, %c0_12, %c32] : memref<2x4x256xf32, #tpu.memory_space<vmem>>, vector<2x4x16xf32>
    %c0_13 = arith.constant 0 : index
    %c0_14 = arith.constant 0 : index
    %c55 = arith.constant 55 : index
    %7 = vector.load %arg4[%c0_13, %c0_14, %c55] : memref<2x4x512xf32, #tpu.memory_space<vmem>>, vector<2x4x16xf32>
    tpu.vector_store %arg4[%c0_13, %c0_14, %c55], %6 {strides = array<i32>} : memref<2x4x512xf32, #tpu.memory_space<vmem>>, vector<2x4x16xf32>,
    %c0_15 = arith.constant 0 : index
    %c0_16 = arith.constant 0 : index
    %c48 = arith.constant 48 : index
    %8 = vector.load %arg1[%c0_15, %c0_16, %c48] : memref<2x4x256xf32, #tpu.memory_space<vmem>>, vector<2x4x16xf32>
    %c0_17 = arith.constant 0 : index
    %c0_18 = arith.constant 0 : index
    %c73 = arith.constant 73 : index
    %9 = vector.load %arg4[%c0_17, %c0_18, %c73] : memref<2x4x512xf32, #tpu.memory_space<vmem>>, vector<2x4x16xf32>
    tpu.vector_store %arg4[%c0_17, %c0_18, %c73], %8 {strides = array<i32>} : memref<2x4x512xf32, #tpu.memory_space<vmem>>, vector<2x4x16xf32>,
    %c0_19 = arith.constant 0 : index
    %c0_20 = arith.constant 0 : index
    %c64 = arith.constant 64 : index
    %10 = vector.load %arg1[%c0_19, %c0_20, %c64] : memref<2x4x256xf32, #tpu.memory_space<vmem>>, vector<2x4x16xf32>
    %c0_21 = arith.constant 0 : index
    %c0_22 = arith.constant 0 : index
    %c91 = arith.constant 91 : index
    %11 = vector.load %arg4[%c0_21, %c0_22, %c91] : memref<2x4x512xf32, #tpu.memory_space<vmem>>, vector<2x4x16xf32>
    tpu.vector_store %arg4[%c0_21, %c0_22, %c91], %10 {strides = array<i32>} : memref<2x4x512xf32, #tpu.memory_space<vmem>>, vector<2x4x16xf32>,
    %c0_23 = arith.constant 0 : index
    %c0_24 = arith.constant 0 : index
    %c80 = arith.constant 80 : index
    %12 = vector.load %arg1[%c0_23, %c0_24, %c80] : memref<2x4x256xf32, #tpu.memory_space<vmem>>, vector<2x4x16xf32>
    %c0_25 = arith.constant 0 : index
    %c0_26 = arith.constant 0 : index
    %c109 = arith.constant 109 : index
    %13 = vector.load %arg4[%c0_25, %c0_26, %c109] : memref<2x4x512xf32, #tpu.memory_space<vmem>>, vector<2x4x16xf32>
    tpu.vector_store %arg4[%c0_25, %c0_26, %c109], %12 {strides = array<i32>} : memref<2x4x512xf32, #tpu.memory_space<vmem>>, vector<2x4x16xf32>,
    %c0_27 = arith.constant 0 : index
    %c0_28 = arith.constant 0 : index
    %c96 = arith.constant 96 : index
    %14 = vector.load %arg1[%c0_27, %c0_28, %c96] : memref<2x4x256xf32, #tpu.memory_space<vmem>>, vector<2x4x16xf32>
    %c0_29 = arith.constant 0 : index
    %c0_30 = arith.constant 0 : index
    %c127 = arith.constant 127 : index
    %15 = vector.load %arg4[%c0_29, %c0_30, %c127] : memref<2x4x512xf32, #tpu.memory_space<vmem>>, vector<2x4x16xf32>
    tpu.vector_store %arg4[%c0_29, %c0_30, %c127], %14 {strides = array<i32>} : memref<2x4x512xf32, #tpu.memory_space<vmem>>, vector<2x4x16xf32>,
    %c0_31 = arith.constant 0 : index
    %c0_32 = arith.constant 0 : index
    %c112 = arith.constant 112 : index
    %16 = vector.load %arg1[%c0_31, %c0_32, %c112] : memref<2x4x256xf32, #tpu.memory_space<vmem>>, vector<2x4x16xf32>
    %c0_33 = arith.constant 0 : index
    %c0_34 = arith.constant 0 : index
    %c145 = arith.constant 145 : index
    %17 = vector.load %arg4[%c0_33, %c0_34, %c145] : memref<2x4x512xf32, #tpu.memory_space<vmem>>, vector<2x4x16xf32>
    tpu.vector_store %arg4[%c0_33, %c0_34, %c145], %16 {strides = array<i32>} : memref<2x4x512xf32, #tpu.memory_space<vmem>>, vector<2x4x16xf32>,
    %c0_35 = arith.constant 0 : index
    %c0_36 = arith.constant 0 : index
    %c128 = arith.constant 128 : index
    %18 = vector.load %arg1[%c0_35, %c0_36, %c128] : memref<2x4x256xf32, #tpu.memory_space<vmem>>, vector<2x4x16xf32>
    %c0_37 = arith.constant 0 : index
    %c0_38 = arith.constant 0 : index
    %c163 = arith.constant 163 : index
    %19 = vector.load %arg4[%c0_37, %c0_38, %c163] : memref<2x4x512xf32, #tpu.memory_space<vmem>>, vector<2x4x16xf32>
    tpu.vector_store %arg4[%c0_37, %c0_38, %c163], %18 {strides = array<i32>} : memref<2x4x512xf32, #tpu.memory_space<vmem>>, vector<2x4x16xf32>,
    %c0_39 = arith.constant 0 : index
    %c0_40 = arith.constant 0 : index
    %c144 = arith.constant 144 : index
    %20 = vector.load %arg1[%c0_39, %c0_40, %c144] : memref<2x4x256xf32, #tpu.memory_space<vmem>>, vector<2x4x16xf32>
    %c0_41 = arith.constant 0 : index
    %c0_42 = arith.constant 0 : index
    %c181 = arith.constant 181 : index
    %21 = vector.load %arg4[%c0_41, %c0_42, %c181] : memref<2x4x512xf32, #tpu.memory_space<vmem>>, vector<2x4x16xf32>
    tpu.vector_store %arg4[%c0_41, %c0_42, %c181], %20 {strides = array<i32>} : memref<2x4x512xf32, #tpu.memory_space<vmem>>, vector<2x4x16xf32>,
    %c0_43 = arith.constant 0 : index
    %c0_44 = arith.constant 0 : index
    %c160 = arith.constant 160 : index
    %22 = vector.load %arg1[%c0_43, %c0_44, %c160] : memref<2x4x256xf32, #tpu.memory_space<vmem>>, vector<2x4x16xf32>
    %c0_45 = arith.constant 0 : index
    %c0_46 = arith.constant 0 : index
    %c199 = arith.constant 199 : index
    %23 = vector.load %arg4[%c0_45, %c0_46, %c199] : memref<2x4x512xf32, #tpu.memory_space<vmem>>, vector<2x4x16xf32>
    tpu.vector_store %arg4[%c0_45, %c0_46, %c199], %22 {strides = array<i32>} : memref<2x4x512xf32, #tpu.memory_space<vmem>>, vector<2x4x16xf32>,
    %c0_47 = arith.constant 0 : index
    %c0_48 = arith.constant 0 : index
    %c176 = arith.constant 176 : index
    %24 = vector.load %arg1[%c0_47, %c0_48, %c176] : memref<2x4x256xf32, #tpu.memory_space<vmem>>, vector<2x4x16xf32>
    %c0_49 = arith.constant 0 : index
    %c0_50 = arith.constant 0 : index
    %c217 = arith.constant 217 : index
    %25 = vector.load %arg4[%c0_49, %c0_50, %c217] : memref<2x4x512xf32, #tpu.memory_space<vmem>>, vector<2x4x16xf32>
    tpu.vector_store %arg4[%c0_49, %c0_50, %c217], %24 {strides = array<i32>} : memref<2x4x512xf32, #tpu.memory_space<vmem>>, vector<2x4x16xf32>,
    %c0_51 = arith.constant 0 : index
    %c0_52 = arith.constant 0 : index
    %c192 = arith.constant 192 : index
    %26 = vector.load %arg1[%c0_51, %c0_52, %c192] : memref<2x4x256xf32, #tpu.memory_space<vmem>>, vector<2x4x16xf32>
    %c0_53 = arith.constant 0 : index
    %c0_54 = arith.constant 0 : index
    %c235 = arith.constant 235 : index
    %27 = vector.load %arg4[%c0_53, %c0_54, %c235] : memref<2x4x512xf32, #tpu.memory_space<vmem>>, vector<2x4x16xf32>
    tpu.vector_store %arg4[%c0_53, %c0_54, %c235], %26 {strides = array<i32>} : memref<2x4x512xf32, #tpu.memory_space<vmem>>, vector<2x4x16xf32>,
    %c0_55 = arith.constant 0 : index
    %c0_56 = arith.constant 0 : index
    %c208 = arith.constant 208 : index
    %28 = vector.load %arg1[%c0_55, %c0_56, %c208] : memref<2x4x256xf32, #tpu.memory_space<vmem>>, vector<2x4x16xf32>
    %c0_57 = arith.constant 0 : index
    %c0_58 = arith.constant 0 : index
    %c253 = arith.constant 253 : index
    %29 = vector.load %arg4[%c0_57, %c0_58, %c253] : memref<2x4x512xf32, #tpu.memory_space<vmem>>, vector<2x4x16xf32>
    tpu.vector_store %arg4[%c0_57, %c0_58, %c253], %28 {strides = array<i32>} : memref<2x4x512xf32, #tpu.memory_space<vmem>>, vector<2x4x16xf32>,
    %c0_59 = arith.constant 0 : index
    %c0_60 = arith.constant 0 : index
    %c224 = arith.constant 224 : index
    %30 = vector.load %arg1[%c0_59, %c0_60, %c224] : memref<2x4x256xf32, #tpu.memory_space<vmem>>, vector<2x4x16xf32>
    %c0_61 = arith.constant 0 : index
    %c0_62 = arith.constant 0 : index
    %c271 = arith.constant 271 : index
    %31 = vector.load %arg4[%c0_61, %c0_62, %c271] : memref<2x4x512xf32, #tpu.memory_space<vmem>>, vector<2x4x16xf32>
    tpu.vector_store %arg4[%c0_61, %c0_62, %c271], %30 {strides = array<i32>} : memref<2x4x512xf32, #tpu.memory_space<vmem>>, vector<2x4x16xf32>,
    %c0_63 = arith.constant 0 : index
    %c0_64 = arith.constant 0 : index
    %c240 = arith.constant 240 : index
    %32 = vector.load %arg1[%c0_63, %c0_64, %c240] : memref<2x4x256xf32, #tpu.memory_space<vmem>>, vector<2x4x16xf32>
    %c0_65 = arith.constant 0 : index
    %c0_66 = arith.constant 0 : index
    %c289 = arith.constant 289 : index
    %33 = vector.load %arg4[%c0_65, %c0_66, %c289] : memref<2x4x512xf32, #tpu.memory_space<vmem>>, vector<2x4x16xf32>
    tpu.vector_store %arg4[%c0_65, %c0_66, %c289], %32 {strides = array<i32>} : memref<2x4x512xf32, #tpu.memory_space<vmem>>, vector<2x4x16xf32>,
    %cst_67 = arith.constant 0.000000e+00 : f32
    %34 = vector.broadcast %cst_67 : f32 to vector<2x4x384xf32>
    %c0_68 = arith.constant 0 : index
    %c0_69 = arith.constant 0 : index
    %c0_70 = arith.constant 0 : index
    %35 = vector.load %arg2[%c0_68, %c0_69, %c0_70] : memref<2x4x9xf32, #tpu.memory_space<vmem>>, vector<2x4x1xf32>
    %c0_71 = arith.constant 0 : index
    %c0_72 = arith.constant 0 : index
    %c0_73 = arith.constant 0 : index
    %36 = vector.load %arg4[%c0_71, %c0_72, %c0_73] : memref<2x4x512xf32, #tpu.memory_space<vmem>>, vector<2x4x384xf32>
    %37 = vector.broadcast %35 : vector<2x4x1xf32> to vector<2x4x384xf32>
    %38 = arith.mulf %37, %36 : vector<2x4x384xf32>
    %39 = arith.addf %34, %38 : vector<2x4x384xf32>
    %c0_74 = arith.constant 0 : index
    %c0_75 = arith.constant 0 : index
    %c1 = arith.constant 1 : index
    %40 = vector.load %arg2[%c0_74, %c0_75, %c1] : memref<2x4x9xf32, #tpu.memory_space<vmem>>, vector<2x4x1xf32>
    %c0_76 = arith.constant 0 : index
    %c0_77 = arith.constant 0 : index
    %c1_78 = arith.constant 1 : index
    %41 = vector.load %arg4[%c0_76, %c0_77, %c1_78] : memref<2x4x512xf32, #tpu.memory_space<vmem>>, vector<2x4x384xf32>
    %42 = vector.broadcast %40 : vector<2x4x1xf32> to vector<2x4x384xf32>
    %43 = arith.mulf %42, %41 : vector<2x4x384xf32>
    %44 = arith.addf %39, %43 : vector<2x4x384xf32>
    %c0_79 = arith.constant 0 : index
    %c0_80 = arith.constant 0 : index
    %c2 = arith.constant 2 : index
    %45 = vector.load %arg2[%c0_79, %c0_80, %c2] : memref<2x4x9xf32, #tpu.memory_space<vmem>>, vector<2x4x1xf32>
    %c0_81 = arith.constant 0 : index
    %c0_82 = arith.constant 0 : index
    %c2_83 = arith.constant 2 : index
    %46 = vector.load %arg4[%c0_81, %c0_82, %c2_83] : memref<2x4x512xf32, #tpu.memory_space<vmem>>, vector<2x4x384xf32>
    %47 = vector.broadcast %45 : vector<2x4x1xf32> to vector<2x4x384xf32>
    %48 = arith.mulf %47, %46 : vector<2x4x384xf32>
    %49 = arith.addf %44, %48 : vector<2x4x384xf32>
    %c0_84 = arith.constant 0 : index
    %c0_85 = arith.constant 0 : index
    %c3 = arith.constant 3 : index
    %50 = vector.load %arg2[%c0_84, %c0_85, %c3] : memref<2x4x9xf32, #tpu.memory_space<vmem>>, vector<2x4x1xf32>
    %c0_86 = arith.constant 0 : index
    %c0_87 = arith.constant 0 : index
    %c18 = arith.constant 18 : index
    %51 = vector.load %arg4[%c0_86, %c0_87, %c18] : memref<2x4x512xf32, #tpu.memory_space<vmem>>, vector<2x4x384xf32>
    %52 = vector.broadcast %50 : vector<2x4x1xf32> to vector<2x4x384xf32>
    %53 = arith.mulf %52, %51 : vector<2x4x384xf32>
    %54 = arith.addf %49, %53 : vector<2x4x384xf32>
    %c0_88 = arith.constant 0 : index
    %c0_89 = arith.constant 0 : index
    %c4 = arith.constant 4 : index
    %55 = vector.load %arg2[%c0_88, %c0_89, %c4] : memref<2x4x9xf32, #tpu.memory_space<vmem>>, vector<2x4x1xf32>
    %c0_90 = arith.constant 0 : index
    %c0_91 = arith.constant 0 : index
    %c19_92 = arith.constant 19 : index
    %56 = vector.load %arg4[%c0_90, %c0_91, %c19_92] : memref<2x4x512xf32, #tpu.memory_space<vmem>>, vector<2x4x384xf32>
    %57 = vector.broadcast %55 : vector<2x4x1xf32> to vector<2x4x384xf32>
    %58 = arith.mulf %57, %56 : vector<2x4x384xf32>
    %59 = arith.addf %54, %58 : vector<2x4x384xf32>
    %c0_93 = arith.constant 0 : index
    %c0_94 = arith.constant 0 : index
    %c5 = arith.constant 5 : index
    %60 = vector.load %arg2[%c0_93, %c0_94, %c5] : memref<2x4x9xf32, #tpu.memory_space<vmem>>, vector<2x4x1xf32>
    %c0_95 = arith.constant 0 : index
    %c0_96 = arith.constant 0 : index
    %c20 = arith.constant 20 : index
    %61 = vector.load %arg4[%c0_95, %c0_96, %c20] : memref<2x4x512xf32, #tpu.memory_space<vmem>>, vector<2x4x384xf32>
    %62 = vector.broadcast %60 : vector<2x4x1xf32> to vector<2x4x384xf32>
    %63 = arith.mulf %62, %61 : vector<2x4x384xf32>
    %64 = arith.addf %59, %63 : vector<2x4x384xf32>
    %c0_97 = arith.constant 0 : index
    %c0_98 = arith.constant 0 : index
    %c6 = arith.constant 6 : index
    %65 = vector.load %arg2[%c0_97, %c0_98, %c6] : memref<2x4x9xf32, #tpu.memory_space<vmem>>, vector<2x4x1xf32>
    %c0_99 = arith.constant 0 : index
    %c0_100 = arith.constant 0 : index
    %c36 = arith.constant 36 : index
    %66 = vector.load %arg4[%c0_99, %c0_100, %c36] : memref<2x4x512xf32, #tpu.memory_space<vmem>>, vector<2x4x384xf32>
    %67 = vector.broadcast %65 : vector<2x4x1xf32> to vector<2x4x384xf32>
    %68 = arith.mulf %67, %66 : vector<2x4x384xf32>
    %69 = arith.addf %64, %68 : vector<2x4x384xf32>
    %c0_101 = arith.constant 0 : index
    %c0_102 = arith.constant 0 : index
    %c7 = arith.constant 7 : index
    %70 = vector.load %arg2[%c0_101, %c0_102, %c7] : memref<2x4x9xf32, #tpu.memory_space<vmem>>, vector<2x4x1xf32>
    %c0_103 = arith.constant 0 : index
    %c0_104 = arith.constant 0 : index
    %c37_105 = arith.constant 37 : index
    %71 = vector.load %arg4[%c0_103, %c0_104, %c37_105] : memref<2x4x512xf32, #tpu.memory_space<vmem>>, vector<2x4x384xf32>
    %72 = vector.broadcast %70 : vector<2x4x1xf32> to vector<2x4x384xf32>
    %73 = arith.mulf %72, %71 : vector<2x4x384xf32>
    %74 = arith.addf %69, %73 : vector<2x4x384xf32>
    %c0_106 = arith.constant 0 : index
    %c0_107 = arith.constant 0 : index
    %c8 = arith.constant 8 : index
    %75 = vector.load %arg2[%c0_106, %c0_107, %c8] : memref<2x4x9xf32, #tpu.memory_space<vmem>>, vector<2x4x1xf32>
    %c0_108 = arith.constant 0 : index
    %c0_109 = arith.constant 0 : index
    %c38 = arith.constant 38 : index
    %76 = vector.load %arg4[%c0_108, %c0_109, %c38] : memref<2x4x512xf32, #tpu.memory_space<vmem>>, vector<2x4x384xf32>
    %77 = vector.broadcast %75 : vector<2x4x1xf32> to vector<2x4x384xf32>
    %78 = arith.mulf %77, %76 : vector<2x4x384xf32>
    %79 = arith.addf %74, %78 : vector<2x4x384xf32>
    %cst_110 = arith.constant dense<0.000000e+00> : vector<2x384xf32>
    %80 = vector.multi_reduction <add>, %79, %cst_110 [1] : vector<2x4x384xf32> to vector<2x384xf32>
    %81 = vector.shape_cast %80 : vector<2x384xf32> to vector<2x1x384xf32>
    %c0_111 = arith.constant 0 : index
    %c0_112 = arith.constant 0 : index
    %c0_113 = arith.constant 0 : index
    %82 = vector.load %arg3[%c0_111, %c0_112, %c0_113] : memref<2x1x384xf32, #tpu.memory_space<vmem>>, vector<2x1x384xf32>
    tpu.vector_store %arg3[%c0_111, %c0_112, %c0_113], %81 {strides = array<i32>} : memref<2x1x384xf32, #tpu.memory_space<vmem>>, vector<2x1x384xf32>,
    return
  }
  func.func @transform_0(%arg0: i32) -> (i32, i32, i32) {
    %c0_i32 = arith.constant 0 : i32
    %c0_i32_0 = arith.constant 0 : i32
    %c0_i32_1 = arith.constant 0 : i32
    return %arg0, %c0_i32, %c0_i32_0 : i32, i32, i32
  }
  func.func @transform_1(%arg0: i32) -> (i32, i32, i32) {
    %c0_i32 = arith.constant 0 : i32
    %c0_i32_0 = arith.constant 0 : i32
    %c0_i32_1 = arith.constant 0 : i32
    return %arg0, %c0_i32, %c0_i32_0 : i32, i32, i32
  }
  func.func @transform_2(%arg0: i32) -> (i32, i32, i32) {
    %c0_i32 = arith.constant 0 : i32
    %c0_i32_0 = arith.constant 0 : i32
    %c0_i32_1 = arith.constant 0 : i32
    return %arg0, %c0_i32, %c0_i32_0 : i32, i32, i32
  }
}

</mosaic_0001>

<llo_original>
// kernel: tpu_custom_call.1
$region0: #{tpu_custom_call.1}
  #allocation0 [shape = 'u32[]', space=smem, size = 0x4, offset = 0x4, fixed_abs, tag = 'smem constant byte address 0x4 - core index']
  #allocation1 [shape = 'u32[144,128]{1,0:T(1,128)}', space=vmem, size = 0x12000, scoped, tag = 'internal scratch']
  #allocation2 [shape = 'f32[2,4,512]{2,1,0:T(4,128)}', space=vmem, size = 0x4000, scoped, tag = 'scratch operand']
  %s0 = inlined_call_operand.hbm [shape: f32[2,4,256], index: 0, kind: input, shape index: {}]
  %s1 = inlined_call_operand.hbm [shape: f32[2,4,9], index: 1, kind: input, shape index: {}]
  %s2 = inlined_call_operand.hbm [shape: f32[2,1,384], index: 2, kind: output, shape index: {}]
  %s3 = sld [smem:[#allocation0]]
  $region26: #{tpu_custom_call.1} parent=0
    _
  %s5 = ssub.s32 1, %s3
  %s6 = scalar_select 0, %s5, %s3
  $region1: #{tpu_custom_call.1} parent=0
    #allocation3 [shape = 'u8[8192]{0}', space=vmem, size = 0x2000, scoped, tag = 'input window, operand 0, single buffered']
    #allocation4 [shape = 's32[1]{0}', space=sflag, size = 0x4, scoped, tag = 'scoped memory for tpu_custom_call.1']
    #allocation5 [shape = 's32[1]{0}', space=sflag, size = 0x4, scoped, tag = 'scoped memory for tpu_custom_call.1']
    #allocation6 [shape = 'u8[4096]{0}', space=vmem, size = 0x1000, scoped, tag = 'input window, operand 1, single buffered']
    #allocation7 [shape = 's32[1]{0}', space=sflag, size = 0x4, scoped, tag = 'scoped memory for tpu_custom_call.1']
    #allocation8 [shape = 'u8[3072]{0}', space=vmem, size = 0xc00, scoped, tag = 'output window, operand 0, single buffered']
    %7 = vsyncpa [#allocation4], 0
    %8 = vsyncpa [#allocation7], 0
    %9 = vsyncpa [#allocation5], 0
    // Predicated region
    $region2: #{tpu_custom_call.1} parent=1 // pred_check
      _
    $region3: #{tpu_custom_call.1} parent=1 // pred_check_branch
      %11 = sbr.rel (0) target = $region5
    $region4: #{tpu_custom_call.1} parent=1 // pred_region
      %s13 = ssub.s32 256, 256
      %14 = vsyncadd [#allocation4], %s13
      %s15 = sshll.u32 [#allocation3], 4
      %s16 = int_to_ptr.vmem [resolvable:$true] %s15
      %21 = dma.hbm_to_vmem [thread:$0]  %s0, 256, %s16, [#allocation4], 128, 128, 8
    $region5: #{tpu_custom_call.1} parent=1 // pred_fallthru
      _
    // Predicated region
    $region6: #{tpu_custom_call.1} parent=1 // pred_check
      _
    $region7: #{tpu_custom_call.1} parent=1 // pred_check_branch
      %23 = sbr.rel (0) target = $region9
    $region8: #{tpu_custom_call.1} parent=1 // pred_region
      %s25 = ssub.s32 128, 128
      %26 = vsyncadd [#allocation7], %s25
      %s27 = sshll.u32 [#allocation6], 4
      %s28 = int_to_ptr.vmem [resolvable:$true] %s27
      %33 = dma.hbm_to_vmem [thread:$0]  %s1, 128, %s28, [#allocation7], 64, 64, 4
    $region9: #{tpu_custom_call.1} parent=1 // pred_fallthru
      _
    // Predicated region
    $region10: #{tpu_custom_call.1} parent=1 // pred_check
      _
    $region11: #{tpu_custom_call.1} parent=1 // pred_check_branch
      %35 = sbr.rel (0) target = $region13
    $region12: #{tpu_custom_call.1} parent=1 // pred_region
      %36 = dma.done [#allocation4], 256
    $region13: #{tpu_custom_call.1} parent=1 // pred_fallthru
      _
    // Predicated region
    $region14: #{tpu_custom_call.1} parent=1 // pred_check
      _
    $region15: #{tpu_custom_call.1} parent=1 // pred_check_branch
      %38 = sbr.rel (0) target = $region17
    $region16: #{tpu_custom_call.1} parent=1 // pred_region
      %39 = dma.done [#allocation7], 128
    $region17: #{tpu_custom_call.1} parent=1 // pred_fallthru
      _
    %40 = vst [vmem:[#allocation2] sm:$0xff] 0.0
    %41 = vst [vmem:[#allocation2 + $0x8] sm:$0xff] 0.0
    %42 = vst [vmem:[#allocation2 + $0x10] sm:$0xff] 0.0
    %43 = vst [vmem:[#allocation2 + $0x18] sm:$0xff] 0.0
    %v44 = vld [vmem:[#allocation3] sm:$0xf]
    %v45 = vld [vmem:[#allocation3 + $0x8] sm:$0xf]
    %48 = vrot.lane.b32.xlu0 %v44, 19
    %v49 = vpop.permute.xlu0 %48
    %50 = vrot.lane.b32.xlu0 %v45, 19
    %v51 = vpop.permute.xlu0 %50
    %vm54 = vcmask 281752
    %55 = vst.msk [vmem:[#allocation2] sm:$0xf] %vm54, %v49
    %56 = vst.msk [vmem:[#allocation2 + $0x10] sm:$0xf] %vm54, %v51
    %v57 = vld [vmem:[#allocation3] sm:$0xf]
    %v58 = vld [vmem:[#allocation3 + $0x8] sm:$0xf]
    %61 = vrot.lane.b32.xlu0 %v57, 21
    %v62 = vpop.permute.xlu0 %61
    %63 = vrot.lane.b32.xlu0 %v58, 21
    %v64 = vpop.permute.xlu0 %63
    %vm67 = vcmask 429352
    %68 = vst.msk [vmem:[#allocation2] sm:$0xf] %vm67, %v62
    %69 = vst.msk [vmem:[#allocation2 + $0x10] sm:$0xf] %vm67, %v64
    %v70 = vld [vmem:[#allocation3] sm:$0xf]
    %v71 = vld [vmem:[#allocation3 + $0x8] sm:$0xf]
    %74 = vrot.lane.b32.xlu0 %v70, 23
    %v75 = vpop.permute.xlu0 %74
    %76 = vrot.lane.b32.xlu0 %v71, 23
    %v77 = vpop.permute.xlu0 %76
    %vm80 = vcmask 576952
    %81 = vst.msk [vmem:[#allocation2] sm:$0xf] %vm80, %v75
    %82 = vst.msk [vmem:[#allocation2 + $0x10] sm:$0xf] %vm80, %v77
    %v83 = vld [vmem:[#allocation3] sm:$0xf]
    %v84 = vld [vmem:[#allocation3 + $0x8] sm:$0xf]
    %87 = vrot.lane.b32.xlu0 %v83, 25
    %v88 = vpop.permute.xlu0 %87
    %89 = vrot.lane.b32.xlu0 %v84, 25
    %v90 = vpop.permute.xlu0 %89
    %vm93 = vcmask 724552
    %94 = vst.msk [vmem:[#allocation2] sm:$0xf] %vm93, %v88
    %95 = vst.msk [vmem:[#allocation2 + $0x10] sm:$0xf] %vm93, %v90
    %v96 = vld [vmem:[#allocation3] sm:$0xf]
    %v97 = vld [vmem:[#allocation3 + $0x8] sm:$0xf]
    %100 = vrot.lane.b32.xlu0 %v96, 27
    %v101 = vpop.permute.xlu0 %100
    %102 = vrot.lane.b32.xlu0 %v97, 27
    %v103 = vpop.permute.xlu0 %102
    %vm106 = vcmask 872152
    %107 = vst.msk [vmem:[#allocation2] sm:$0xf] %vm106, %v101
    %108 = vst.msk [vmem:[#allocation2 + $0x10] sm:$0xf] %vm106, %v103
    %v109 = vld [vmem:[#allocation3] sm:$0xf]
    %v110 = vld [vmem:[#allocation3 + $0x8] sm:$0xf]
    %113 = vrot.lane.b32.xlu0 %v109, 29
    %v114 = vpop.permute.xlu0 %113
    %115 = vrot.lane.b32.xlu0 %v110, 29
    %v116 = vpop.permute.xlu0 %115
    %vm119 = vcmask 1019752
    %120 = vst.msk [vmem:[#allocation2] sm:$0xf] %vm119, %v114
    %121 = vst.msk [vmem:[#allocation2 + $0x10] sm:$0xf] %vm119, %v116
    %v122 = vld [vmem:[#allocation3] sm:$0xf]
    %v123 = vld [vmem:[#allocation3 + $0x8] sm:$0xf]
    %126 = vrot.lane.b32.xlu0 %v122, 31
    %v127 = vpop.permute.xlu0 %126
    %128 = vrot.lane.b32.xlu0 %v123, 31
    %v129 = vpop.permute.xlu0 %128
    %v130 = vrot.slane %v127, 4
    %v131 = vrot.slane %v129, 4
    %vm132 = vcmask 252928
    %v133 = vsel %vm132, %v130, %v127
    %v134 = vsel %vm132, %v131, %v129
    %vm137 = vcmask 1044472
    %vm138 = vcmask 121860
    %vm139 = vmor %vm138, %vm137
    %140 = vst.msk [vmem:[#allocation2] sm:$0xff] %vm139, %v133
    %141 = vst.msk [vmem:[#allocation2 + $0x10] sm:$0xff] %vm139, %v134
    %v142 = vld [vmem:[#allocation3] sm:$0xf]
    %v143 = vld [vmem:[#allocation3 + $0x8] sm:$0xf]
    %146 = vrot.lane.b32.xlu0 %v142, 33
    %v147 = vpop.permute.xlu0 %146
    %148 = vrot.lane.b32.xlu0 %v143, 33
    %v149 = vpop.permute.xlu0 %148
    %vm152 = vcmask 265352
    %153 = vst.msk [vmem:[#allocation2 + $0x4] sm:$0xf] %vm152, %v147
    %154 = vst.msk [vmem:[#allocation2 + $0x14] sm:$0xf] %vm152, %v149
    %v155 = vld [vmem:[#allocation3 + $0x4] sm:$0xf]
    %v156 = vld [vmem:[#allocation3 + $0xc] sm:$0xf]
    %159 = vrot.lane.b32.xlu0 %v155, 35
    %v160 = vpop.permute.xlu0 %159
    %161 = vrot.lane.b32.xlu0 %v156, 35
    %v162 = vpop.permute.xlu0 %161
    %vm165 = vcmask 412952
    %166 = vst.msk [vmem:[#allocation2 + $0x4] sm:$0xf] %vm165, %v160
    %167 = vst.msk [vmem:[#allocation2 + $0x14] sm:$0xf] %vm165, %v162
    %v168 = vld [vmem:[#allocation3 + $0x4] sm:$0xf]
    %v169 = vld [vmem:[#allocation3 + $0xc] sm:$0xf]
    %172 = vrot.lane.b32.xlu0 %v168, 37
    %v173 = vpop.permute.xlu0 %172
    %174 = vrot.lane.b32.xlu0 %v169, 37
    %v175 = vpop.permute.xlu0 %174
    %vm178 = vcmask 560552
    %179 = vst.msk [vmem:[#allocation2 + $0x4] sm:$0xf] %vm178, %v173
    %180 = vst.msk [vmem:[#allocation2 + $0x14] sm:$0xf] %vm178, %v175
    %v181 = vld [vmem:[#allocation3 + $0x4] sm:$0xf]
    %v182 = vld [vmem:[#allocation3 + $0xc] sm:$0xf]
    %185 = vrot.lane.b32.xlu0 %v181, 39
    %v186 = vpop.permute.xlu0 %185
    %187 = vrot.lane.b32.xlu0 %v182, 39
    %v188 = vpop.permute.xlu0 %187
    %vm191 = vcmask 708152
    %192 = vst.msk [vmem:[#allocation2 + $0x4] sm:$0xf] %vm191, %v186
    %193 = vst.msk [vmem:[#allocation2 + $0x14] sm:$0xf] %vm191, %v188
    %v194 = vld [vmem:[#allocation3 + $0x4] sm:$0xf]
    %v195 = vld [vmem:[#allocation3 + $0xc] sm:$0xf]
    %198 = vrot.lane.b32.xlu0 %v194, 41
    %v199 = vpop.permute.xlu0 %198
    %200 = vrot.lane.b32.xlu0 %v195, 41
    %v201 = vpop.permute.xlu0 %200
    %vm204 = vcmask 855752
    %205 = vst.msk [vmem:[#allocation2 + $0x4] sm:$0xf] %vm204, %v199
    %206 = vst.msk [vmem:[#allocation2 + $0x14] sm:$0xf] %vm204, %v201
    %v207 = vld [vmem:[#allocation3 + $0x4] sm:$0xf]
    %v208 = vld [vmem:[#allocation3 + $0xc] sm:$0xf]
    %211 = vrot.lane.b32.xlu0 %v207, 43
    %v212 = vpop.permute.xlu0 %211
    %213 = vrot.lane.b32.xlu0 %v208, 43
    %v214 = vpop.permute.xlu0 %213
    %vm217 = vcmask 1003352
    %218 = vst.msk [vmem:[#allocation2 + $0x4] sm:$0xf] %vm217, %v212
    %219 = vst.msk [vmem:[#allocation2 + $0x14] sm:$0xf] %vm217, %v214
    %v220 = vld [vmem:[#allocation3 + $0x4] sm:$0xf]
    %v221 = vld [vmem:[#allocation3 + $0xc] sm:$0xf]
    %224 = vrot.lane.b32.xlu0 %v220, 45
    %v225 = vpop.permute.xlu0 %224
    %226 = vrot.lane.b32.xlu0 %v221, 45
    %v227 = vpop.permute.xlu0 %226
    %v228 = vrot.slane %v225, 4
    %v229 = vrot.slane %v227, 4
    %vm230 = vcmask 367616
    %v231 = vsel %vm230, %v228, %v225
    %v232 = vsel %vm230, %v229, %v227
    %vm235 = vcmask 1044456
    %vm236 = vcmask 105476
    %vm237 = vmor %vm236, %vm235
    %238 = vst.msk [vmem:[#allocation2 + $0x4] sm:$0xff] %vm237, %v231
    %239 = vst.msk [vmem:[#allocation2 + $0x14] sm:$0xff] %vm237, %v232
    %v240 = vld [vmem:[#allocation3 + $0x4] sm:$0xf]
    %v241 = vld [vmem:[#allocation3 + $0xc] sm:$0xf]
    %244 = vrot.lane.b32.xlu0 %v240, 47
    %v245 = vpop.permute.xlu0 %244
    %246 = vrot.lane.b32.xlu0 %v241, 47
    %v247 = vpop.permute.xlu0 %246
    %vm250 = vcmask 248952
    %251 = vst.msk [vmem:[#allocation2 + $0x8] sm:$0xf] %vm250, %v245
    %252 = vst.msk [vmem:[#allocation2 + $0x18] sm:$0xf] %vm250, %v247
    %v253 = vld [vmem:[#allocation3 + $0x4] sm:$0xf]
    %v254 = vld [vmem:[#allocation3 + $0xc] sm:$0xf]
    %257 = vrot.lane.b32.xlu0 %v253, 49
    %v258 = vpop.permute.xlu0 %257
    %259 = vrot.lane.b32.xlu0 %v254, 49
    %v260 = vpop.permute.xlu0 %259
    %vm263 = vcmask 396552
    %264 = vst.msk [vmem:[#allocation2 + $0x8] sm:$0xf] %vm263, %v258
    %265 = vst.msk [vmem:[#allocation2 + $0x18] sm:$0xf] %vm263, %v260
    %v266 = vld [vmem:[#allocation6] sm:$0xf]
    %v267 = vld [vmem:[#allocation6 + $0x4] sm:$0xf]
    %v268 = vld [vmem:[#allocation2] sm:$0xff]
    %v269 = vld [vmem:[#allocation2 + $0x8] sm:$0xf]
    %v270 = vld [vmem:[#allocation2 + $0x10] sm:$0xff]
    %v271 = vld [vmem:[#allocation2 + $0x18] sm:$0xf]
    %273 = vset.pattern.permute.xlu0 0
    %274 = vperm.xlu0 %273, %v266
    %v275 = vpop.permute.xlu0 %274
    %278 = vset.pattern.permute.xlu0 0
    %279 = vperm.xlu0 %278, %v267
    %v280 = vpop.permute.xlu0 %279
    %v284 = vcombine.high %v268, %v268
    %v285 = vcombine.high %v270, %v270
    %v288 = vmul.f32 %v275, %v268
    %v289 = vmul.f32 %v275, %v284
    %v290 = vmul.f32 %v275, %v269
    %v291 = vmul.f32 %v280, %v270
    %v292 = vmul.f32 %v280, %v285
    %v293 = vmul.f32 %v280, %v271
    %v294 = vadd.f32 %v288, 0.0
    %v295 = vadd.f32 %v289, 0.0
    %v296 = vadd.f32 %v290, 0.0
    %v297 = vadd.f32 %v291, 0.0
    %v298 = vadd.f32 %v292, 0.0
    %v299 = vadd.f32 %v293, 0.0
    %v300 = vld [vmem:[#allocation6] sm:$0xf]
    %v301 = vld [vmem:[#allocation6 + $0x4] sm:$0xf]
    %v302 = vld [vmem:[#allocation2] sm:$0xff]
    %v303 = vld [vmem:[#allocation2 + $0x8] sm:$0xff]
    %v304 = vld [vmem:[#allocation2 + $0x10] sm:$0xff]
    %v305 = vld [vmem:[#allocation2 + $0x18] sm:$0xff]
    %307 = vset.pattern.permute.xlu0 1
    %308 = vperm.xlu0 %307, %v300
    %v309 = vpop.permute.xlu0 %308
    %312 = vset.pattern.permute.xlu0 1
    %313 = vperm.xlu0 %312, %v301
    %v314 = vpop.permute.xlu0 %313
    %v320 = vcombine.high %v302, %v302
    %v321 = vcombine.high %v303, %v303
    %v322 = vcombine.high %v304, %v304
    %v323 = vcombine.high %v305, %v305
    %324 = vrot.lane.b32.xlu0 %v302, 127
    %v325 = vpop.permute.xlu0 %324
    %326 = vrot.lane.b32.xlu0 %v320, 127
    %v327 = vpop.permute.xlu0 %326
    %328 = vrot.lane.b32.xlu0 %v303, 127
    %v329 = vpop.permute.xlu0 %328
    %330 = vrot.lane.b32.xlu0 %v321, 127
    %v331 = vpop.permute.xlu0 %330
    %332 = vrot.lane.b32.xlu0 %v304, 127
    %v333 = vpop.permute.xlu0 %332
    %334 = vrot.lane.b32.xlu0 %v322, 127
    %v335 = vpop.permute.xlu0 %334
    %336 = vrot.lane.b32.xlu0 %v305, 127
    %v337 = vpop.permute.xlu0 %336
    %338 = vrot.lane.b32.xlu0 %v323, 127
    %v339 = vpop.permute.xlu0 %338
    %vm340 = vcmask 1039360
    %v341 = vsel %vm340, %v325, %v327
    %v342 = vsel %vm340, %v327, %v329
    %v343 = vsel %vm340, %v329, %v331
    %v344 = vsel %vm340, %v333, %v335
    %v345 = vsel %vm340, %v335, %v337
    %v346 = vsel %vm340, %v337, %v339
    %v353 = vmul.f32 %v309, %v341
    %v354 = vmul.f32 %v309, %v342
    %v355 = vmul.f32 %v309, %v343
    %v356 = vmul.f32 %v314, %v344
    %v357 = vmul.f32 %v314, %v345
    %v358 = vmul.f32 %v314, %v346
    %v359 = vadd.f32 %v294, %v353
    %v360 = vadd.f32 %v295, %v354
    %v361 = vadd.f32 %v296, %v355
    %v362 = vadd.f32 %v297, %v356
    %v363 = vadd.f32 %v298, %v357
    %v364 = vadd.f32 %v299, %v358
    %v365 = vld [vmem:[#allocation6] sm:$0xf]
    %v366 = vld [vmem:[#allocation6 + $0x4] sm:$0xf]
    %v367 = vld [vmem:[#allocation2] sm:$0xff]
    %v368 = vld [vmem:[#allocation2 + $0x8] sm:$0xff]
    %v369 = vld [vmem:[#allocation2 + $0x10] sm:$0xff]
    %v370 = vld [vmem:[#allocation2 + $0x18] sm:$0xff]
    %372 = vset.pattern.permute.xlu0 2
    %373 = vperm.xlu0 %372, %v365
    %v374 = vpop.permute.xlu0 %373
    %377 = vset.pattern.permute.xlu0 2
    %378 = vperm.xlu0 %377, %v366
    %v379 = vpop.permute.xlu0 %378
    %v385 = vcombine.high %v367, %v367
    %v386 = vcombine.high %v368, %v368
    %v387 = vcombine.high %v369, %v369
    %v388 = vcombine.high %v370, %v370
    %389 = vrot.lane.b32.xlu0 %v367, 126
    %v390 = vpop.permute.xlu0 %389
    %391 = vrot.lane.b32.xlu0 %v385, 126
    %v392 = vpop.permute.xlu0 %391
    %393 = vrot.lane.b32.xlu0 %v368, 126
    %v394 = vpop.permute.xlu0 %393
    %395 = vrot.lane.b32.xlu0 %v386, 126
    %v396 = vpop.permute.xlu0 %395
    %397 = vrot.lane.b32.xlu0 %v369, 126
    %v398 = vpop.permute.xlu0 %397
    %399 = vrot.lane.b32.xlu0 %v387, 126
    %v400 = vpop.permute.xlu0 %399
    %401 = vrot.lane.b32.xlu0 %v370, 126
    %v402 = vpop.permute.xlu0 %401
    %403 = vrot.lane.b32.xlu0 %v388, 126
    %v404 = vpop.permute.xlu0 %403
    %vm405 = vcmask 1031168
    %v406 = vsel %vm405, %v390, %v392
    %v407 = vsel %vm405, %v392, %v394
    %v408 = vsel %vm405, %v394, %v396
    %v409 = vsel %vm405, %v398, %v400
    %v410 = vsel %vm405, %v400, %v402
    %v411 = vsel %vm405, %v402, %v404
    %v418 = vmul.f32 %v374, %v406
    %v419 = vmul.f32 %v374, %v407
    %v420 = vmul.f32 %v374, %v408
    %v421 = vmul.f32 %v379, %v409
    %v422 = vmul.f32 %v379, %v410
    %v423 = vmul.f32 %v379, %v411
    %v424 = vadd.f32 %v359, %v418
    %v425 = vadd.f32 %v360, %v419
    %v426 = vadd.f32 %v361, %v420
    %v427 = vadd.f32 %v362, %v421
    %v428 = vadd.f32 %v363, %v422
    %v429 = vadd.f32 %v364, %v423
    %v430 = vld [vmem:[#allocation6] sm:$0xf]
    %v431 = vld [vmem:[#allocation6 + $0x4] sm:$0xf]
    %v432 = vld [vmem:[#allocation2] sm:$0xff]
    %v433 = vld [vmem:[#allocation2 + $0x8] sm:$0xff]
    %v434 = vld [vmem:[#allocation2 + $0x10] sm:$0xff]
    %v435 = vld [vmem:[#allocation2 + $0x18] sm:$0xff]
    %437 = vset.pattern.permute.xlu0 3
    %438 = vperm.xlu0 %437, %v430
    %v439 = vpop.permute.xlu0 %438
    %442 = vset.pattern.permute.xlu0 3
    %443 = vperm.xlu0 %442, %v431
    %v444 = vpop.permute.xlu0 %443
    %v450 = vcombine.high %v432, %v432
    %v451 = vcombine.high %v433, %v433
    %v452 = vcombine.high %v434, %v434
    %v453 = vcombine.high %v435, %v435
    %454 = vrot.lane.b32.xlu0 %v432, 110
    %v455 = vpop.permute.xlu0 %454
    %456 = vrot.lane.b32.xlu0 %v450, 110
    %v457 = vpop.permute.xlu0 %456
    %458 = vrot.lane.b32.xlu0 %v433, 110
    %v459 = vpop.permute.xlu0 %458
    %460 = vrot.lane.b32.xlu0 %v451, 110
    %v461 = vpop.permute.xlu0 %460
    %462 = vrot.lane.b32.xlu0 %v434, 110
    %v463 = vpop.permute.xlu0 %462
    %464 = vrot.lane.b32.xlu0 %v452, 110
    %v465 = vpop.permute.xlu0 %464
    %466 = vrot.lane.b32.xlu0 %v435, 110
    %v467 = vpop.permute.xlu0 %466
    %468 = vrot.lane.b32.xlu0 %v453, 110
    %v469 = vpop.permute.xlu0 %468
    %vm470 = vcmask 900096
    %v471 = vsel %vm470, %v455, %v457
    %v472 = vsel %vm470, %v457, %v459
    %v473 = vsel %vm470, %v459, %v461
    %v474 = vsel %vm470, %v463, %v465
    %v475 = vsel %vm470, %v465, %v467
    %v476 = vsel %vm470, %v467, %v469
    %v483 = vmul.f32 %v439, %v471
    %v484 = vmul.f32 %v439, %v472
    %v485 = vmul.f32 %v439, %v473
    %v486 = vmul.f32 %v444, %v474
    %v487 = vmul.f32 %v444, %v475
    %v488 = vmul.f32 %v444, %v476
    %v489 = vadd.f32 %v424, %v483
    %v490 = vadd.f32 %v425, %v484
    %v491 = vadd.f32 %v426, %v485
    %v492 = vadd.f32 %v427, %v486
    %v493 = vadd.f32 %v428, %v487
    %v494 = vadd.f32 %v429, %v488
    %v495 = vld [vmem:[#allocation6] sm:$0xf]
    %v496 = vld [vmem:[#allocation6 + $0x4] sm:$0xf]
    %v497 = vld [vmem:[#allocation2] sm:$0xff]
    %v498 = vld [vmem:[#allocation2 + $0x8] sm:$0xff]
    %v499 = vld [vmem:[#allocation2 + $0x10] sm:$0xff]
    %v500 = vld [vmem:[#allocation2 + $0x18] sm:$0xff]
    %502 = vset.pattern.permute.xlu0 4
    %503 = vperm.xlu0 %502, %v495
    %v504 = vpop.permute.xlu0 %503
    %507 = vset.pattern.permute.xlu0 4
    %508 = vperm.xlu0 %507, %v496
    %v509 = vpop.permute.xlu0 %508
    %v515 = vcombine.high %v497, %v497
    %v516 = vcombine.high %v498, %v498
    %v517 = vcombine.high %v499, %v499
    %v518 = vcombine.high %v500, %v500
    %519 = vrot.lane.b32.xlu0 %v497, 109
    %v520 = vpop.permute.xlu0 %519
    %521 = vrot.lane.b32.xlu0 %v515, 109
    %v522 = vpop.permute.xlu0 %521
    %523 = vrot.lane.b32.xlu0 %v498, 109
    %v524 = vpop.permute.xlu0 %523
    %525 = vrot.lane.b32.xlu0 %v516, 109
    %v526 = vpop.permute.xlu0 %525
    %527 = vrot.lane.b32.xlu0 %v499, 109
    %v528 = vpop.permute.xlu0 %527
    %529 = vrot.lane.b32.xlu0 %v517, 109
    %v530 = vpop.permute.xlu0 %529
    %531 = vrot.lane.b32.xlu0 %v500, 109
    %v532 = vpop.permute.xlu0 %531
    %533 = vrot.lane.b32.xlu0 %v518, 109
    %v534 = vpop.permute.xlu0 %533
    %vm535 = vcmask 891904
    %v536 = vsel %vm535, %v520, %v522
    %v537 = vsel %vm535, %v522, %v524
    %v538 = vsel %vm535, %v524, %v526
    %v539 = vsel %vm535, %v528, %v530
    %v540 = vsel %vm535, %v530, %v532
    %v541 = vsel %vm535, %v532, %v534
    %v548 = vmul.f32 %v504, %v536
    %v549 = vmul.f32 %v504, %v537
    %v550 = vmul.f32 %v504, %v538
    %v551 = vmul.f32 %v509, %v539
    %v552 = vmul.f32 %v509, %v540
    %v553 = vmul.f32 %v509, %v541
    %v554 = vadd.f32 %v489, %v548
    %v555 = vadd.f32 %v490, %v549
    %v556 = vadd.f32 %v491, %v550
    %v557 = vadd.f32 %v492, %v551
    %v558 = vadd.f32 %v493, %v552
    %v559 = vadd.f32 %v494, %v553
    %v560 = vld [vmem:[#allocation6] sm:$0xf]
    %v561 = vld [vmem:[#allocation6 + $0x4] sm:$0xf]
    %v562 = vld [vmem:[#allocation2] sm:$0xff]
    %v563 = vld [vmem:[#allocation2 + $0x8] sm:$0xff]
    %v564 = vld [vmem:[#allocation2 + $0x10] sm:$0xff]
    %v565 = vld [vmem:[#allocation2 + $0x18] sm:$0xff]
    %567 = vset.pattern.permute.xlu0 5
    %568 = vperm.xlu0 %567, %v560
    %v569 = vpop.permute.xlu0 %568
    %572 = vset.pattern.permute.xlu0 5
    %573 = vperm.xlu0 %572, %v561
    %v574 = vpop.permute.xlu0 %573
    %v580 = vcombine.high %v562, %v562
    %v581 = vcombine.high %v563, %v563
    %v582 = vcombine.high %v564, %v564
    %v583 = vcombine.high %v565, %v565
    %584 = vrot.lane.b32.xlu0 %v562, 108
    %v585 = vpop.permute.xlu0 %584
    %586 = vrot.lane.b32.xlu0 %v580, 108
    %v587 = vpop.permute.xlu0 %586
    %588 = vrot.lane.b32.xlu0 %v563, 108
    %v589 = vpop.permute.xlu0 %588
    %590 = vrot.lane.b32.xlu0 %v581, 108
    %v591 = vpop.permute.xlu0 %590
    %592 = vrot.lane.b32.xlu0 %v564, 108
    %v593 = vpop.permute.xlu0 %592
    %594 = vrot.lane.b32.xlu0 %v582, 108
    %v595 = vpop.permute.xlu0 %594
    %596 = vrot.lane.b32.xlu0 %v565, 108
    %v597 = vpop.permute.xlu0 %596
    %598 = vrot.lane.b32.xlu0 %v583, 108
    %v599 = vpop.permute.xlu0 %598
    %vm600 = vcmask 883712
    %v601 = vsel %vm600, %v585, %v587
    %v602 = vsel %vm600, %v587, %v589
    %v603 = vsel %vm600, %v589, %v591
    %v604 = vsel %vm600, %v593, %v595
    %v605 = vsel %vm600, %v595, %v597
    %v606 = vsel %vm600, %v597, %v599
    %v613 = vmul.f32 %v569, %v601
    %v614 = vmul.f32 %v569, %v602
    %v615 = vmul.f32 %v569, %v603
    %v616 = vmul.f32 %v574, %v604
    %v617 = vmul.f32 %v574, %v605
    %v618 = vmul.f32 %v574, %v606
    %v619 = vadd.f32 %v554, %v613
    %v620 = vadd.f32 %v555, %v614
    %v621 = vadd.f32 %v556, %v615
    %v622 = vadd.f32 %v557, %v616
    %v623 = vadd.f32 %v558, %v617
    %v624 = vadd.f32 %v559, %v618
    %v625 = vld [vmem:[#allocation6] sm:$0xf]
    %v626 = vld [vmem:[#allocation6 + $0x4] sm:$0xf]
    %v627 = vld [vmem:[#allocation2] sm:$0xff]
    %v628 = vld [vmem:[#allocation2 + $0x8] sm:$0xff]
    %v629 = vld [vmem:[#allocation2 + $0x10] sm:$0xff]
    %v630 = vld [vmem:[#allocation2 + $0x18] sm:$0xff]
    %632 = vset.pattern.permute.xlu0 6
    %633 = vperm.xlu0 %632, %v625
    %v634 = vpop.permute.xlu0 %633
    %637 = vset.pattern.permute.xlu0 6
    %638 = vperm.xlu0 %637, %v626
    %v639 = vpop.permute.xlu0 %638
    %v645 = vcombine.high %v627, %v627
    %v646 = vcombine.high %v628, %v628
    %v647 = vcombine.high %v629, %v629
    %v648 = vcombine.high %v630, %v630
    %649 = vrot.lane.b32.xlu0 %v627, 92
    %v650 = vpop.permute.xlu0 %649
    %651 = vrot.lane.b32.xlu0 %v645, 92
    %v652 = vpop.permute.xlu0 %651
    %653 = vrot.lane.b32.xlu0 %v628, 92
    %v654 = vpop.permute.xlu0 %653
    %655 = vrot.lane.b32.xlu0 %v646, 92
    %v656 = vpop.permute.xlu0 %655
    %657 = vrot.lane.b32.xlu0 %v629, 92
    %v658 = vpop.permute.xlu0 %657
    %659 = vrot.lane.b32.xlu0 %v647, 92
    %v660 = vpop.permute.xlu0 %659
    %661 = vrot.lane.b32.xlu0 %v630, 92
    %v662 = vpop.permute.xlu0 %661
    %663 = vrot.lane.b32.xlu0 %v648, 92
    %v664 = vpop.permute.xlu0 %663
    %vm665 = vcmask 752640
    %v666 = vsel %vm665, %v650, %v652
    %v667 = vsel %vm665, %v652, %v654
    %v668 = vsel %vm665, %v654, %v656
    %v669 = vsel %vm665, %v658, %v660
    %v670 = vsel %vm665, %v660, %v662
    %v671 = vsel %vm665, %v662, %v664
    %v678 = vmul.f32 %v634, %v666
    %v679 = vmul.f32 %v634, %v667
    %v680 = vmul.f32 %v634, %v668
    %v681 = vmul.f32 %v639, %v669
    %v682 = vmul.f32 %v639, %v670
    %v683 = vmul.f32 %v639, %v671
    %v684 = vadd.f32 %v619, %v678
    %v685 = vadd.f32 %v620, %v679
    %v686 = vadd.f32 %v621, %v680
    %v687 = vadd.f32 %v622, %v681
    %v688 = vadd.f32 %v623, %v682
    %v689 = vadd.f32 %v624, %v683
    %v690 = vld [vmem:[#allocation6] sm:$0xf]
    %v691 = vld [vmem:[#allocation6 + $0x4] sm:$0xf]
    %v692 = vld [vmem:[#allocation2] sm:$0xff]
    %v693 = vld [vmem:[#allocation2 + $0x8] sm:$0xff]
    %v694 = vld [vmem:[#allocation2 + $0x10] sm:$0xff]
    %v695 = vld [vmem:[#allocation2 + $0x18] sm:$0xff]
    %697 = vset.pattern.permute.xlu0 7
    %698 = vperm.xlu0 %697, %v690
    %v699 = vpop.permute.xlu0 %698
    %702 = vset.pattern.permute.xlu0 7
    %703 = vperm.xlu0 %702, %v691
    %v704 = vpop.permute.xlu0 %703
    %v710 = vcombine.high %v692, %v692
    %v711 = vcombine.high %v693, %v693
    %v712 = vcombine.high %v694, %v694
    %v713 = vcombine.high %v695, %v695
    %714 = vrot.lane.b32.xlu0 %v692, 91
    %v715 = vpop.permute.xlu0 %714
    %716 = vrot.lane.b32.xlu0 %v710, 91
    %v717 = vpop.permute.xlu0 %716
    %718 = vrot.lane.b32.xlu0 %v693, 91
    %v719 = vpop.permute.xlu0 %718
    %720 = vrot.lane.b32.xlu0 %v711, 91
    %v721 = vpop.permute.xlu0 %720
    %722 = vrot.lane.b32.xlu0 %v694, 91
    %v723 = vpop.permute.xlu0 %722
    %724 = vrot.lane.b32.xlu0 %v712, 91
    %v725 = vpop.permute.xlu0 %724
    %726 = vrot.lane.b32.xlu0 %v695, 91
    %v727 = vpop.permute.xlu0 %726
    %728 = vrot.lane.b32.xlu0 %v713, 91
    %v729 = vpop.permute.xlu0 %728
    %vm730 = vcmask 744448
    %v731 = vsel %vm730, %v715, %v717
    %v732 = vsel %vm730, %v717, %v719
    %v733 = vsel %vm730, %v719, %v721
    %v734 = vsel %vm730, %v723, %v725
    %v735 = vsel %vm730, %v725, %v727
    %v736 = vsel %vm730, %v727, %v729
    %v743 = vmul.f32 %v699, %v731
    %v744 = vmul.f32 %v699, %v732
    %v745 = vmul.f32 %v699, %v733
    %v746 = vmul.f32 %v704, %v734
    %v747 = vmul.f32 %v704, %v735
    %v748 = vmul.f32 %v704, %v736
    %v749 = vadd.f32 %v684, %v743
    %v750 = vadd.f32 %v685, %v744
    %v751 = vadd.f32 %v686, %v745
    %v752 = vadd.f32 %v687, %v746
    %v753 = vadd.f32 %v688, %v747
    %v754 = vadd.f32 %v689, %v748
    %v755 = vld [vmem:[#allocation6] sm:$0xf]
    %v756 = vld [vmem:[#allocation6 + $0x4] sm:$0xf]
    %v757 = vld [vmem:[#allocation2] sm:$0xff]
    %v758 = vld [vmem:[#allocation2 + $0x8] sm:$0xff]
    %v759 = vld [vmem:[#allocation2 + $0x10] sm:$0xff]
    %v760 = vld [vmem:[#allocation2 + $0x18] sm:$0xff]
    %762 = vset.pattern.permute.xlu0 8
    %763 = vperm.xlu0 %762, %v755
    %v764 = vpop.permute.xlu0 %763
    %767 = vset.pattern.permute.xlu0 8
    %768 = vperm.xlu0 %767, %v756
    %v769 = vpop.permute.xlu0 %768
    %v775 = vcombine.high %v757, %v757
    %v776 = vcombine.high %v758, %v758
    %v777 = vcombine.high %v759, %v759
    %v778 = vcombine.high %v760, %v760
    %779 = vrot.lane.b32.xlu0 %v757, 90
    %v780 = vpop.permute.xlu0 %779
    %781 = vrot.lane.b32.xlu0 %v775, 90
    %v782 = vpop.permute.xlu0 %781
    %783 = vrot.lane.b32.xlu0 %v758, 90
    %v784 = vpop.permute.xlu0 %783
    %785 = vrot.lane.b32.xlu0 %v776, 90
    %v786 = vpop.permute.xlu0 %785
    %787 = vrot.lane.b32.xlu0 %v759, 90
    %v788 = vpop.permute.xlu0 %787
    %789 = vrot.lane.b32.xlu0 %v777, 90
    %v790 = vpop.permute.xlu0 %789
    %791 = vrot.lane.b32.xlu0 %v760, 90
    %v792 = vpop.permute.xlu0 %791
    %793 = vrot.lane.b32.xlu0 %v778, 90
    %v794 = vpop.permute.xlu0 %793
    %vm795 = vcmask 736256
    %v796 = vsel %vm795, %v780, %v782
    %v797 = vsel %vm795, %v782, %v784
    %v798 = vsel %vm795, %v784, %v786
    %v799 = vsel %vm795, %v788, %v790
    %v800 = vsel %vm795, %v790, %v792
    %v801 = vsel %vm795, %v792, %v794
    %v808 = vmul.f32 %v764, %v796
    %v809 = vmul.f32 %v764, %v797
    %v810 = vmul.f32 %v764, %v798
    %v811 = vmul.f32 %v769, %v799
    %v812 = vmul.f32 %v769, %v800
    %v813 = vmul.f32 %v769, %v801
    %v814 = vadd.f32 %v749, %v808
    %v815 = vadd.f32 %v750, %v809
    %v816 = vadd.f32 %v751, %v810
    %v817 = vadd.f32 %v752, %v811
    %v818 = vadd.f32 %v753, %v812
    %v819 = vadd.f32 %v754, %v813
    %vm820 = vcmask 1043456
    %v821 = vsel %vm820, %v814, 0.0
    %v822 = vrot.slane %v821, 4
    %v823 = vadd.f32 %v821, %v822
    %v824 = vrot.slane %v823, 2
    %v825 = vadd.f32 %v823, %v824
    %v826 = vrot.slane %v825, 1
    %v827 = vadd.f32 %v825, %v826
    %v828 = vsel %vm820, %v815, 0.0
    %v829 = vrot.slane %v828, 4
    %v830 = vadd.f32 %v828, %v829
    %v831 = vrot.slane %v830, 2
    %v832 = vadd.f32 %v830, %v831
    %v833 = vrot.slane %v832, 1
    %v834 = vadd.f32 %v832, %v833
    %v835 = vsel %vm820, %v816, 0.0
    %v836 = vrot.slane %v835, 4
    %v837 = vadd.f32 %v835, %v836
    %v838 = vrot.slane %v837, 2
    %v839 = vadd.f32 %v837, %v838
    %v840 = vrot.slane %v839, 1
    %v841 = vadd.f32 %v839, %v840
    %v842 = vsel %vm820, %v817, 0.0
    %v843 = vrot.slane %v842, 4
    %v844 = vadd.f32 %v842, %v843
    %v845 = vrot.slane %v844, 2
    %v846 = vadd.f32 %v844, %v845
    %v847 = vrot.slane %v846, 1
    %v848 = vadd.f32 %v846, %v847
    %v849 = vsel %vm820, %v818, 0.0
    %v850 = vrot.slane %v849, 4
    %v851 = vadd.f32 %v849, %v850
    %v852 = vrot.slane %v851, 2
    %v853 = vadd.f32 %v851, %v852
    %v854 = vrot.slane %v853, 1
    %v855 = vadd.f32 %v853, %v854
    %v856 = vsel %vm820, %v819, 0.0
    %v857 = vrot.slane %v856, 4
    %v858 = vadd.f32 %v856, %v857
    %v859 = vrot.slane %v858, 2
    %v860 = vadd.f32 %v858, %v859
    %v861 = vrot.slane %v860, 1
    %v862 = vadd.f32 %v860, %v861
    %v869 = vcombine.low %v827, %v834
    %v871 = vunpack.c.l.s4 1966171168
    %v872 = vunpack.c.0.s8 %v871
    %v873 = vlaneseq
    %v874 = vshrl.u32 %v873, 7
    %v875 = vsub.s32 %v872, %v874
    %v876 = vrot.slane %v869, %v875
    %v878 = vunpack.c.l.s4 1966171168
    %v879 = vunpack.c.0.s8 %v878
    %v880 = vlaneseq
    %v881 = vshrl.u32 %v880, 7
    %v882 = vsub.s32 %v879, %v881
    %v883 = vrot.slane %v841, %v882
    %v884 = vcombine.low %v876, %v883
    %v886 = vunpack.c.l.s4 1966171168
    %v887 = vunpack.c.0.s8 %v886
    %v888 = vlaneseq
    %v889 = vshrl.u32 %v888, 7
    %v890 = vsub.s32 %v887, %v889
    %v891 = vrot.slane %v884, %v890
    %v892 = vcombine.low %v848, %v855
    %v894 = vunpack.c.l.s4 1966171168
    %v895 = vunpack.c.0.s8 %v894
    %v896 = vlaneseq
    %v897 = vshrl.u32 %v896, 7
    %v898 = vsub.s32 %v895, %v897
    %v899 = vrot.slane %v892, %v898
    %v901 = vunpack.c.l.s4 1966171168
    %v902 = vunpack.c.0.s8 %v901
    %v903 = vlaneseq
    %v904 = vshrl.u32 %v903, 7
    %v905 = vsub.s32 %v902, %v904
    %v906 = vrot.slane %v862, %v905
    %v907 = vcombine.low %v899, %v906
    %v909 = vunpack.c.l.s4 1966171168
    %v910 = vunpack.c.0.s8 %v909
    %v911 = vlaneseq
    %v912 = vshrl.u32 %v911, 7
    %v913 = vsub.s32 %v910, %v912
    %v914 = vrot.slane %v907, %v913
    %v917 = vlaneseq
    %vm918 = vcmp.ge.s32.totalorder %v917, 0
    %vm919 = vcmp.lt.s32.totalorder %v917, 384
    %vm920 = vmand %vm918, %vm919
    %921 = vst.msk [vmem:[#allocation8] sm:$0x7] %vm920, %v891
    %922 = vst.msk [vmem:[#allocation8 + $0x3] sm:$0x7] %vm920, %v914
    // Predicated region
    $region18: #{tpu_custom_call.1} parent=1 // pred_check
      _
    $region19: #{tpu_custom_call.1} parent=1 // pred_check_branch
      %924 = sbr.rel (0) target = $region21
    $region20: #{tpu_custom_call.1} parent=1 // pred_region
      %s926 = ssub.s32 96, 96
      %927 = vsyncadd [#allocation5], %s926
      %s928 = sshll.u32 [#allocation8], 4
      %s929 = int_to_ptr.vmem [resolvable:$true] %s928
      %934 = dma.vmem_to_hbm [thread:$0]  %s929, 96, %s2, [#allocation5], 48, 48, 3
    $region21: #{tpu_custom_call.1} parent=1 // pred_fallthru
      _
    // Predicated region
    $region22: #{tpu_custom_call.1} parent=1 // pred_check
      _
    $region23: #{tpu_custom_call.1} parent=1 // pred_check_branch
      %936 = sbr.rel (0) target = $region25
    $region24: #{tpu_custom_call.1} parent=1 // pred_region
      %937 = dma.done [#allocation5], 96
    $region25: #{tpu_custom_call.1} parent=1 // pred_fallthru
      _
    %938 = vsyncpa [#allocation4], 1
    %939 = vsyncpa [#allocation7], 1
    %940 = vsyncpa [#allocation5], 1

</llo_original>
